<compile_context>
chip_gen: v6e
topology: v6e:2x2x1
jax: 0.10.0
libtpu: 0.0.40
codegen_flags: <defaults>
</compile_context>

<pallas_src>
import functools

import jax
import jax.numpy as jnp
from jax.experimental import pallas as pl
from jax.experimental.pallas import tpu as pltpu


def _contract_kernel(x_ref, o_ref, *, s, C, TH, W):
    """One (image, row-block) step: x block (1, C, s*TH, W) -> out block (1, s*s*C, TH, Ws)."""
    Ws = W // s

    # Rows (c, hh) of the current block, with W on lanes.  hh = s*hs_local + s1.
    rows = x_ref[0].reshape(C * s * TH, W).astype(jnp.float32)

    # 0/1 selection matrices for the column (lane) de-interleave, built on the
    # VPU from 2-D iotas.  Multiplying by them on the (otherwise idle) MXU
    # compacts lanes w = s*ws + s2 into a dense Ws-wide result.
    w_id = jax.lax.broadcasted_iota(jnp.int32, (W, Ws), 0)
    ws_id = jax.lax.broadcasted_iota(jnp.int32, (W, Ws), 1)

    for s2 in range(s):
        sel = jnp.where(w_id == ws_id * s + s2, 1.0, 0.0).astype(jnp.float32)
        # b[(c, hh), ws] = x[c, h0 + hh, s*ws + s2]
        b = jnp.dot(rows, sel, preferred_element_type=jnp.float32)
        # Split rows (c, hh) -> (c, hs_local, s1); lane dim (Ws) unchanged.
        b4 = b.reshape(C, TH, s, Ws)
        for s1 in range(s):
            ch0 = (s1 * s + s2) * C
            blk = b4[:, :, s1:s1 + 1, :].reshape(C, TH, Ws)
            o_ref[0, ch0:ch0 + C, :, :] = blk.astype(o_ref.dtype)


def _pick_row_tile(C, Hs, W, s, dtype_bytes, budget=4 << 20):
    """Largest output-row tile (multiple of 8 dividing Hs) whose input block fits `budget`."""
    if C * s * Hs * W * dtype_bytes <= budget or Hs % 8 != 0:
        return Hs  # whole image per step (small inputs / non-8-aligned sizes)
    best = 8
    th = 8
    while th <= Hs:
        if Hs % th == 0 and C * s * th * W * dtype_bytes <= budget:
            best = th
        th += 8
    return best


def contract(x, gain=2):
    """Pallas TPU forward of Contract: (N, C, H, W) -> (N, C*gain**2, H//gain, W//gain)."""
    N, C, H, W = x.shape
    s = gain
    assert H % s == 0 and W % s == 0, (H, W, s)
    Hs, Ws = H // s, W // s

    TH = _pick_row_tile(C, Hs, W, s, x.dtype.itemsize)
    grid = (N, Hs // TH)

    kernel = functools.partial(_contract_kernel, s=s, C=C, TH=TH, W=W)
    return pl.pallas_call(
        kernel,
        out_shape=jax.ShapeDtypeStruct((N, C * s * s, Hs, Ws), x.dtype),
        grid_spec=pltpu.PrefetchScalarGridSpec(
            num_scalar_prefetch=0,
            grid=grid,
            in_specs=[
                pl.BlockSpec((1, C, s * TH, W), lambda n, hb: (n, 0, hb, 0)),
            ],
            out_specs=pl.BlockSpec((1, C * s * s, TH, Ws),
                                   lambda n, hb: (n, 0, hb, 0)),
        ),
        compiler_params=pltpu.CompilerParams(
            dimension_semantics=("parallel", "parallel")),
    )(x)


def _contract_ref(x, gain=2):
    """Pure-JAX mirror of the PyTorch Contract.forward (view/permute/view)."""
    N, C, H, W = x.shape
    s = gain
    y = x.reshape(N, C, H // s, s, W // s, s)
    y = jnp.transpose(y, (0, 3, 5, 1, 2, 4))
    return y.reshape(N, C * s * s, H // s, W // s)


if __name__ == "__main__":
    N, C, H, W = 2, 4, 16, 16
    key = jax.random.PRNGKey(0)
    x = jax.random.normal(key, (N, C, H, W), dtype=jnp.float32)
    # Use bf16-representable f32 test values so the 0/1 selection matmul is
    # bit-exact regardless of the platform's f32 MXU pass configuration.
    x = x.astype(jnp.bfloat16).astype(jnp.float32)

    out = jax.block_until_ready(contract(x, gain=2))
    assert out.shape == (N, C * 4, H // 2, W // 2), out.shape

    ref = _contract_ref(x, gain=2)
    assert jnp.allclose(out, ref, atol=1e-6, rtol=1e-6), float(jnp.abs(out - ref).max())
    print("KERNEL_OK")
</pallas_src>

<mosaic_0001>
module attributes {stable_mosaic.version = 11 : i64} {
  func.func @_contract_kernel(%arg0: i32, %arg1: i32, %arg2: memref<1x4x16x16xf32, #tpu.memory_space<vmem>>, %arg3: memref<1x16x8x8xf32, #tpu.memory_space<vmem>>) attributes {dimension_semantics = [#tpu.dimension_semantics<parallel>, #tpu.dimension_semantics<parallel>], iteration_bounds = array<i64: 2, 1>, scalar_prefetch = 0 : i64, scratch_operands = 0 : i64, tpu.core_type = #tpu.core_type<tc>, window_params = [{transform_indices = @transform_0, window_bounds = array<i64: 1, 4, 16, 16>}, {transform_indices = @transform_1, window_bounds = array<i64: 1, 16, 8, 8>}]} {
    %c0 = arith.constant 0 : index
    %c0_0 = arith.constant 0 : index
    %c0_1 = arith.constant 0 : index
    %c0_2 = arith.constant 0 : index
    %0 = vector.load %arg2[%c0, %c0_0, %c0_1, %c0_2] : memref<1x4x16x16xf32, #tpu.memory_space<vmem>>, vector<1x4x16x16xf32>
    %1 = vector.shape_cast %0 : vector<1x4x16x16xf32> to vector<4x16x16xf32>
    %2 = vector.shape_cast %1 : vector<4x16x16xf32> to vector<64x16xf32>
    %3 = tpu.iota {dimensions = array<i32: 0>} : vector<16x8xi32>
    %4 = tpu.iota {dimensions = array<i32: 1>} : vector<16x8xi32>
    %c2_i32 = arith.constant 2 : i32
    %5 = vector.broadcast %c2_i32 : i32 to vector<16x8xi32>
    %6 = arith.muli %4, %5 : vector<16x8xi32>
    %c0_i32 = arith.constant 0 : i32
    %7 = vector.broadcast %c0_i32 : i32 to vector<16x8xi32>
    %8 = arith.addi %6, %7 : vector<16x8xi32>
    %9 = arith.cmpi eq, %3, %8 : vector<16x8xi32>
    %cst = arith.constant 1.000000e+00 : f32
    %cst_3 = arith.constant 0.000000e+00 : f32
    %10 = vector.broadcast %cst : f32 to vector<16x8xf32>
    %11 = vector.broadcast %cst_3 : f32 to vector<16x8xf32>
    %12 = arith.select %9, %10, %11 : vector<16x8xi1>, vector<16x8xf32>
    %cst_4 = arith.constant dense<0.000000e+00> : vector<64x8xf32>
    %13 = tpu.matmul %2, %12, %cst_4 {dimension_numbers = #tpu.dot_dimension_numbers<[1], [0], [0], [1], [0, 0, 1, 1], [], []>} : vector<64x16xf32>, vector<16x8xf32>, vector<64x8xf32> -> vector<64x8xf32>
    %14 = vector.shape_cast %13 : vector<64x8xf32> to vector<4x8x2x8xf32>
    %15 = vector.extract_strided_slice %14 {offsets = [0, 0, 0, 0], sizes = [4, 8, 1, 8], strides = [1, 1, 1, 1]} : vector<4x8x2x8xf32> to vector<4x8x1x8xf32>
    %16 = vector.shape_cast %15 : vector<4x8x1x8xf32> to vector<4x8x8xf32>
    %c0_5 = arith.constant 0 : index
    %c0_6 = arith.constant 0 : index
    %c0_7 = arith.constant 0 : index
    %c0_8 = arith.constant 0 : index
    %17 = vector.load %arg3[%c0_5, %c0_6, %c0_7, %c0_8] : memref<1x16x8x8xf32, #tpu.memory_space<vmem>>, vector<1x4x8x8xf32>
    %18 = vector.shape_cast %17 : vector<1x4x8x8xf32> to vector<4x8x8xf32>
    %19 = vector.shape_cast %16 : vector<4x8x8xf32> to vector<1x4x8x8xf32>
    tpu.vector_store %arg3[%c0_5, %c0_6, %c0_7, %c0_8], %19 {strides = array<i32>} : memref<1x16x8x8xf32, #tpu.memory_space<vmem>>, vector<1x4x8x8xf32>,
    %20 = vector.extract_strided_slice %14 {offsets = [0, 0, 1, 0], sizes = [4, 8, 1, 8], strides = [1, 1, 1, 1]} : vector<4x8x2x8xf32> to vector<4x8x1x8xf32>
    %21 = vector.shape_cast %20 : vector<4x8x1x8xf32> to vector<4x8x8xf32>
    %c0_9 = arith.constant 0 : index
    %c8 = arith.constant 8 : index
    %c0_10 = arith.constant 0 : index
    %c0_11 = arith.constant 0 : index
    %22 = vector.load %arg3[%c0_9, %c8, %c0_10, %c0_11] : memref<1x16x8x8xf32, #tpu.memory_space<vmem>>, vector<1x4x8x8xf32>
    %23 = vector.shape_cast %22 : vector<1x4x8x8xf32> to vector<4x8x8xf32>
    %24 = vector.shape_cast %21 : vector<4x8x8xf32> to vector<1x4x8x8xf32>
    tpu.vector_store %arg3[%c0_9, %c8, %c0_10, %c0_11], %24 {strides = array<i32>} : memref<1x16x8x8xf32, #tpu.memory_space<vmem>>, vector<1x4x8x8xf32>,
    %c2_i32_12 = arith.constant 2 : i32
    %25 = vector.broadcast %c2_i32_12 : i32 to vector<16x8xi32>
    %26 = arith.muli %4, %25 : vector<16x8xi32>
    %c1_i32 = arith.constant 1 : i32
    %27 = vector.broadcast %c1_i32 : i32 to vector<16x8xi32>
    %28 = arith.addi %26, %27 : vector<16x8xi32>
    %29 = arith.cmpi eq, %3, %28 : vector<16x8xi32>
    %cst_13 = arith.constant 1.000000e+00 : f32
    %cst_14 = arith.constant 0.000000e+00 : f32
    %30 = vector.broadcast %cst_13 : f32 to vector<16x8xf32>
    %31 = vector.broadcast %cst_14 : f32 to vector<16x8xf32>
    %32 = arith.select %29, %30, %31 : vector<16x8xi1>, vector<16x8xf32>
    %cst_15 = arith.constant dense<0.000000e+00> : vector<64x8xf32>
    %33 = tpu.matmul %2, %32, %cst_15 {dimension_numbers = #tpu.dot_dimension_numbers<[1], [0], [0], [1], [0, 0, 1, 1], [], []>} : vector<64x16xf32>, vector<16x8xf32>, vector<64x8xf32> -> vector<64x8xf32>
    %34 = vector.shape_cast %33 : vector<64x8xf32> to vector<4x8x2x8xf32>
    %35 = vector.extract_strided_slice %34 {offsets = [0, 0, 0, 0], sizes = [4, 8, 1, 8], strides = [1, 1, 1, 1]} : vector<4x8x2x8xf32> to vector<4x8x1x8xf32>
    %36 = vector.shape_cast %35 : vector<4x8x1x8xf32> to vector<4x8x8xf32>
    %c0_16 = arith.constant 0 : index
    %c4 = arith.constant 4 : index
    %c0_17 = arith.constant 0 : index
    %c0_18 = arith.constant 0 : index
    %37 = vector.load %arg3[%c0_16, %c4, %c0_17, %c0_18] : memref<1x16x8x8xf32, #tpu.memory_space<vmem>>, vector<1x4x8x8xf32>
    %38 = vector.shape_cast %37 : vector<1x4x8x8xf32> to vector<4x8x8xf32>
    %39 = vector.shape_cast %36 : vector<4x8x8xf32> to vector<1x4x8x8xf32>
    tpu.vector_store %arg3[%c0_16, %c4, %c0_17, %c0_18], %39 {strides = array<i32>} : memref<1x16x8x8xf32, #tpu.memory_space<vmem>>, vector<1x4x8x8xf32>,
    %40 = vector.extract_strided_slice %34 {offsets = [0, 0, 1, 0], sizes = [4, 8, 1, 8], strides = [1, 1, 1, 1]} : vector<4x8x2x8xf32> to vector<4x8x1x8xf32>
    %41 = vector.shape_cast %40 : vector<4x8x1x8xf32> to vector<4x8x8xf32>
    %c0_19 = arith.constant 0 : index
    %c12 = arith.constant 12 : index
    %c0_20 = arith.constant 0 : index
    %c0_21 = arith.constant 0 : index
    %42 = vector.load %arg3[%c0_19, %c12, %c0_20, %c0_21] : memref<1x16x8x8xf32, #tpu.memory_space<vmem>>, vector<1x4x8x8xf32>
    %43 = vector.shape_cast %42 : vector<1x4x8x8xf32> to vector<4x8x8xf32>
    %44 = vector.shape_cast %41 : vector<4x8x8xf32> to vector<1x4x8x8xf32>
    tpu.vector_store %arg3[%c0_19, %c12, %c0_20, %c0_21], %44 {strides = array<i32>} : memref<1x16x8x8xf32, #tpu.memory_space<vmem>>, vector<1x4x8x8xf32>,
    return
  }
  func.func @transform_0(%arg0: i32, %arg1: i32) -> (i32, i32, i32, i32) {
    %c0_i32 = arith.constant 0 : i32
    %c0_i32_0 = arith.constant 0 : i32
    %c0_i32_1 = arith.constant 0 : i32
    return %arg0, %c0_i32, %arg1, %c0_i32_0 : i32, i32, i32, i32
  }
  func.func @transform_1(%arg0: i32, %arg1: i32) -> (i32, i32, i32, i32) {
    %c0_i32 = arith.constant 0 : i32
    %c0_i32_0 = arith.constant 0 : i32
    %c0_i32_1 = arith.constant 0 : i32
    return %arg0, %c0_i32, %arg1, %c0_i32_0 : i32, i32, i32, i32
  }
}

</mosaic_0001>

<llo_original>
// kernel: tpu_custom_call.1
$region0: #{tpu_custom_call.1}
  #allocation0 [shape = 'u32[]', space=smem, size = 0x4, offset = 0x4, fixed_abs, tag = 'smem constant byte address 0x4 - core index']
  #allocation1 [shape = 'u32[144,128]{1,0:T(1,128)}', space=vmem, size = 0x12000, scoped, tag = 'internal scratch']
  %s0 = inlined_call_operand.hbm [shape: f32[2,4,16,16], index: 0, kind: input, shape index: {}]
  %s1 = inlined_call_operand.vmem [shape: f32[2,16,8,8], index: 1, kind: output, shape index: {}]
  %s2 = sld [smem:[#allocation0]]
  $region41: #{tpu_custom_call.1} parent=0
    _
  %s4 = ssub.s32 1, %s2
  %s5 = scalar_select 0, %s4, %s2
  $region1: #{tpu_custom_call.1} parent=0
    #allocation2 [shape = 'u8[65536]{0}', space=vmem, size = 0x10000, scoped, tag = 'input window, operand 0']
    #allocation3 [shape = 's32[2]{0}', space=sflag, size = 0x8, scoped, tag = 'scoped memory for tpu_custom_call.1']
    %6 = vsyncpa [#allocation3], 0
    %s7 = scalar_lea.sflag [#allocation3], 1
    %8 = vsyncpa %s7, 0
    loop: start=0, step=1, limit=4
    $region2: #{tpu_custom_call.1} parent=1 // loop_pre_header
      _
    $region3: #{tpu_custom_call.1} parent=1 // loop_header
      %s10 = sphi 0, %s14
      %p11 = scmp.ge.s32.totalorder %s10, 4
      %s17 = sphi 0, %s29
      %s18 = sphi 0, %s25
      %s19 = sphi 0, %s17
      %s20 = sphi 0, %s18
      %s21 = sphi 0, %s19
      %s22 = sphi 0, %s20
      %s34 = sphi 0, %s36
      %s37 = sphi 0, %s34
      %s38 = sphi 0, %s37
      %s54 = sphi 0, %s38
      %s62 = sphi 0, %s64
      %s65 = sphi 0, %s62
      %s66 = sphi 0, %s65
      %s82 = sphi 0, %s66
    $region4: #{tpu_custom_call.1} parent=1 // loop_header_branch
      %13 = sbr.rel (%p11) target = $region8
    $region5: #{tpu_custom_call.1} parent=1 // loop_body
      %s15 = ssub.s32 %s10, 1
      %s16 = ssub.s32 %s10, 2
      %s23 = sadd.s32 1, %s18
      %p24 = scmp.ge.s32.totalorder %s23, 1
      %s25 = scalar_select %p24, 0, %s23
      %s26 = sadd.s32 1, %s17
      %s27 = scalar_select %p24, %s26, %s17
      %p28 = scmp.ge.s32.totalorder %s27, 2
      %s29 = scalar_select %p28, 0, %s27
      %s30 = ssub.s32 %s17, %s29
      %s31 = ssub.s32 %s18, %s25
      %s32 = sor.u32 %s30, %s31
      %p33 = scmp.eq.s32.totalorder %s32, 0
      %s35 = sadd.s32 %s34, 1
      %s36 = scalar_select %p33, %s34, %s35
      %p39 = pneg %p33
      %p40 = scmp.eq.s32.totalorder %s10, 1
      %p41 = por %p39, %p40
      %p42 = scmp.ne.s32.totalorder %s34, %s37
      %p43 = scmp.eq.s32.totalorder %s10, 0
      %p44 = por %p42, %p43
      %p45 = scmp.ne.s32.totalorder %s34, %s37
      %p46 = scmp.eq.s32.totalorder %s15, 1
      %p47 = por %p45, %p46
      %p48 = scmp.ne.s32.totalorder %s37, %s38
      %p49 = scmp.eq.s32.totalorder %s15, 0
      %p50 = por %p48, %p49
      %p51 = scmp.ne.s32.totalorder %s37, %s38
      %p52 = scmp.eq.s32.totalorder %s16, 1
      %p53 = por %p51, %p52
      %p55 = scmp.ne.s32.totalorder %s38, %s54
      %p56 = scmp.eq.s32.totalorder %s16, 0
      %p57 = por %p55, %p56
      %s58 = ssub.s32 %s17, %s29
      %s59 = ssub.s32 %s18, %s25
      %s60 = sor.u32 %s58, %s59
      %p61 = scmp.eq.s32.totalorder %s60, 0
      %s63 = sadd.s32 %s62, 1
      %s64 = scalar_select %p61, %s62, %s63
      %p67 = pneg %p61
      %p68 = scmp.eq.s32.totalorder %s10, 1
      %p69 = por %p67, %p68
      %p70 = scmp.ne.s32.totalorder %s62, %s65
      %p71 = scmp.eq.s32.totalorder %s10, 0
      %p72 = por %p70, %p71
      %p73 = scmp.ne.s32.totalorder %s62, %s65
      %p74 = scmp.eq.s32.totalorder %s15, 1
      %p75 = por %p73, %p74
      %p76 = scmp.ne.s32.totalorder %s65, %s66
      %p77 = scmp.eq.s32.totalorder %s15, 0
      %p78 = por %p76, %p77
      %p79 = scmp.ne.s32.totalorder %s65, %s66
      %p80 = scmp.eq.s32.totalorder %s16, 1
      %p81 = por %p79, %p80
      %p83 = scmp.ne.s32.totalorder %s66, %s82
      %p84 = scmp.eq.s32.totalorder %s16, 0
      %p85 = por %p83, %p84
      %p86 = scmp.le.s32.totalorder 1, %s10
      %p87 = scmp.lt.s32.totalorder %s10, 3
      %p88 = pnand %p86, %p87
      %p89 = pneg %p88
      // Predicated region
      $region9: #{tpu_custom_call.1} parent=5 // pred_check
        _
      $region10: #{tpu_custom_call.1} parent=5 // pred_check_branch
        %91 = sbr.rel (%p88) target = $region12
      $region11: #{tpu_custom_call.1} parent=5 // pred_region
        %s92 = ssub.s32 %s10, 1
      $region12: #{tpu_custom_call.1} parent=5 // pred_fallthru
        _
      %p93 = scmp.lt.s32.totalorder %s10, 2
      // Predicated region
      $region13: #{tpu_custom_call.1} parent=5 // pred_check
        %p94 = pneg %p93
      $region14: #{tpu_custom_call.1} parent=5 // pred_check_branch
        %96 = sbr.rel (%p94) target = $region16
      $region15: #{tpu_custom_call.1} parent=5 // pred_region
        // Predicated region
        $region17: #{tpu_custom_call.1} parent=15 // pred_check
          %p97 = pneg %p44
        $region18: #{tpu_custom_call.1} parent=15 // pred_check_branch
          %99 = sbr.rel (%p97) target = $region20
        $region19: #{tpu_custom_call.1} parent=15 // pred_region
          %s100 = sand.u32 %s34, 1
          %s101 = scalar_lea.sflag [#allocation3], %s100
          %s102 = sand.u32 %s34, 1
          %s103 = smul.addr %s102, 64
          %s104 = scalar_lea.vmem [#allocation2], %s103
          %s105 = smul.u32 2, %s18
          %s107 = ssub.s32 1024, 1024
          %108 = vsyncadd %s101, %s107
          %s109 = smul.addr %s17, 8
          %s110 = sadd.s32 %s105, %s109
          %s111 = smul.addr %s110, 128
          %s112 = scalar_lea.hbm %s0, %s111
          %s113 = sshll.u32 %s104, 4
          %s114 = int_to_ptr.vmem [resolvable:$true] %s113
          %119 = dma.hbm_to_vmem [thread:$0]  %s112, 1024, %s114, %s101, 128, 128, 8
        $region20: #{tpu_custom_call.1} parent=15 // pred_fallthru
          _
      $region16: #{tpu_custom_call.1} parent=5 // pred_fallthru
        _
      %p120 = scmp.le.s32.totalorder 1, %s10
      %p121 = scmp.lt.s32.totalorder %s10, 3
      %p122 = pnand %p120, %p121
      %p123 = pneg %p122
      // Predicated region
      $region21: #{tpu_custom_call.1} parent=5 // pred_check
        _
      $region22: #{tpu_custom_call.1} parent=5 // pred_check_branch
        %125 = sbr.rel (%p122) target = $region24
      $region23: #{tpu_custom_call.1} parent=5 // pred_region
        %s126 = ssub.s32 %s10, 1
        %s127 = sand.u32 %s37, 1
        %s128 = scalar_lea.sflag [#allocation3], %s127
        %s129 = sand.u32 %s37, 1
        %s130 = smul.addr %s129, 64
        %s131 = scalar_lea.vmem [#allocation2], %s130
        // Predicated region
        $region25: #{tpu_custom_call.1} parent=23 // pred_check
          %p132 = pneg %p50
        $region26: #{tpu_custom_call.1} parent=23 // pred_check_branch
          %134 = sbr.rel (%p132) target = $region28
        $region27: #{tpu_custom_call.1} parent=23 // pred_region
          %135 = dma.done %s128, 1024
        $region28: #{tpu_custom_call.1} parent=23 // pred_fallthru
          _
        %s136 = sand.u32 %s37, 1
        %s137 = scalar_lea.sflag [#allocation3], %s136
        %s138 = sand.u32 %s37, 1
        %s139 = smul.addr %s138, 64
        %s140 = scalar_lea.vmem [#allocation2], %s139
        %p141 = pneg %p50
        %p142 = pneg %p47
        %p143 = pneg %p78
        %p144 = pneg %p75
        %p145 = scmp.lt.s32.totalorder %s19, 1
        %s146 = scalar_select %p145, %s19, 1
        %p147 = scmp.lt.s32.totalorder %s20, 0
        %s148 = scalar_select %p147, %s20, 0
        %s149 = smul.addr %s146, 16
        %s150 = sadd.s32 %s148, %s149
        %s151 = smul.addr %s150, 8
        %s152 = scalar_lea.vmem %s1, %s151
        %s153 = smul.u32 2, %s20
        %p154 = scmp.lt.s32.totalorder %s19, 1
        %s155 = scalar_select %p154, %s19, 1
        %p156 = scmp.lt.s32.totalorder %s20, 0
        %s157 = scalar_select %p156, %s20, 0
        %s158 = smul.addr %s155, 16
        %s159 = sadd.s32 %s157, %s158
        %s160 = smul.addr %s159, 8
        %s161 = scalar_lea.vmem %s1, %s160
        %v162 = vld [vmem:[%s131] sm:$0xff]
        %v163 = vld [vmem:[%s131 + $0x8] sm:$0xff]
        %v164 = vld [vmem:[%s131 + $0x10] sm:$0xff]
        %v165 = vld [vmem:[%s131 + $0x18] sm:$0xff]
        %v166 = vld [vmem:[%s131 + $0x20] sm:$0xff]
        %v167 = vld [vmem:[%s131 + $0x28] sm:$0xff]
        %v168 = vld [vmem:[%s131 + $0x30] sm:$0xff]
        %v169 = vld [vmem:[%s131 + $0x38] sm:$0xff]
        %v170 = vlaneseq
        %v171 = vshrl.u32 %v170, 7
        %v172 = vadd.s32 %v171, 8
        %v173 = vlaneseq
        %v174 = vand.u32 %v173, 127
        %v175 = vmul.u32 %v174, 2
        %vm176 = vcmp.eq.s32.totalorder %v171, %v175
        %vm177 = vcmp.eq.s32.totalorder %v172, %v175
        %v178 = vsel %vm176, 1.0, 0.0
        %v179 = vsel %vm177, 1.0, 0.0
        %vm180 = vcmask 130048
        %v182 = vsel %vm180, %v162, 0
        %v185 = vsel %vm180, %v163, 0
        %v188 = vsel %vm180, %v164, 0
        %v191 = vsel %vm180, %v165, 0
        %v194 = vsel %vm180, %v166, 0
        %v197 = vsel %vm180, %v167, 0
        %v200 = vsel %vm180, %v168, 0
        %v203 = vsel %vm180, %v169, 0
        %205 = vmatprep.subr.mxu0 0.0
        %206 = vmatpush1.msra.mxu0 0.0
        %207 = vmatprep.subr.mxu0 0.0
        %208 = vmatpush1.msra.mxu0 0.0
        %209 = vmatprep.subr.mxu0 0.0
        %210 = vmatpush1.msra.mxu0 0.0
        %211 = vmatprep.subr.mxu0 0.0
        %212 = vmatpush1.msra.mxu0 0.0
        %213 = vmatprep.subr.mxu0 0.0
        %214 = vmatpush1.msra.mxu0 0.0
        %215 = vmatprep.subr.mxu0 0.0
        %216 = vmatpush1.msra.mxu0 0.0
        %217 = vmatprep.subr.mxu0 0.0
        %218 = vmatpush1.msra.mxu0 0.0
        %219 = vmatprep.subr.mxu0 0.0
        %220 = vmatpush1.msra.mxu0 0.0
        %221 = vmatprep.subr.mxu0 0.0
        %222 = vmatpush1.msra.mxu0 0.0
        %223 = vmatprep.subr.mxu0 0.0
        %224 = vmatpush1.msra.mxu0 0.0
        %225 = vmatprep.subr.mxu0 0.0
        %226 = vmatpush1.msra.mxu0 0.0
        %227 = vmatprep.subr.mxu0 0.0
        %228 = vmatpush1.msra.mxu0 0.0
        %229 = vmatprep.subr.mxu0 0.0
        %230 = vmatpush1.msra.mxu0 0.0
        %231 = vmatprep.subr.mxu0 0.0
        %232 = vmatpush1.msra.mxu0 0.0
        %233 = vmatprep.subr.mxu0 0.0
        %234 = vmatpush1.msra.mxu0 %v179
        %235 = vmatprep.subr.mxu0 0.0
        %236 = vmatpush1.msra.mxu0 %v178
        %237 = vmatprep.subr.mxu0 0.0
        %238 = vmatpush2.msra.mxu0 0.0
        %239 = vmatprep.subr.mxu0 0.0
        %240 = vmatpush2.msra.mxu0 0.0
        %241 = vmatprep.subr.mxu0 0.0
        %242 = vmatpush2.msra.mxu0 0.0
        %243 = vmatprep.subr.mxu0 0.0
        %244 = vmatpush2.msra.mxu0 0.0
        %245 = vmatprep.subr.mxu0 0.0
        %246 = vmatpush2.msra.mxu0 0.0
        %247 = vmatprep.subr.mxu0 0.0
        %248 = vmatpush2.msra.mxu0 0.0
        %249 = vmatprep.subr.mxu0 0.0
        %250 = vmatpush2.msra.mxu0 0.0
        %251 = vmatprep.subr.mxu0 0.0
        %252 = vmatpush2.msra.mxu0 0.0
        %253 = vmatprep.subr.mxu0 0.0
        %254 = vmatpush2.msra.mxu0 0.0
        %255 = vmatprep.subr.mxu0 0.0
        %256 = vmatpush2.msra.mxu0 0.0
        %257 = vmatprep.subr.mxu0 0.0
        %258 = vmatpush2.msra.mxu0 0.0
        %259 = vmatprep.subr.mxu0 0.0
        %260 = vmatpush2.msra.mxu0 0.0
        %261 = vmatprep.subr.mxu0 0.0
        %262 = vmatpush2.msra.mxu0 0.0
        %263 = vmatprep.subr.mxu0 0.0
        %264 = vmatpush2.msra.mxu0 0.0
        %265 = vmatprep.subr.mxu0 0.0
        %266 = vmatpush2.msra.mxu0 0.0
        %267 = vmatprep.subr.mxu0 0.0
        %268 = vmatpush2.msra.mxu0 0.0
        %269 = vmatprep.mubr.f32.mxu0 0.0
        %270 = vmatmul.mubr.f32.gmra.mxu0 %v182
        %v271 = vpop.f32.mrf.mxu0
        %v272 = vadd.f32 0.0, %v271
        %v273 = vpop.f32.mrf.mxu0
        %274 = vmatprep.mubr.f32.mxu0 0.0
        %275 = vmatmul.mubr.f32.gmra.mxu0 %v185
        %v276 = vpop.f32.mrf.mxu0
        %v277 = vadd.f32 0.0, %v276
        %v278 = vpop.f32.mrf.mxu0
        %279 = vmatprep.mubr.f32.mxu0 0.0
        %280 = vmatmul.mubr.f32.gmra.mxu0 %v188
        %v281 = vpop.f32.mrf.mxu0
        %v282 = vadd.f32 0.0, %v281
        %v283 = vpop.f32.mrf.mxu0
        %284 = vmatprep.mubr.f32.mxu0 0.0
        %285 = vmatmul.mubr.f32.gmra.mxu0 %v191
        %v286 = vpop.f32.mrf.mxu0
        %v287 = vadd.f32 0.0, %v286
        %v288 = vpop.f32.mrf.mxu0
        %289 = vmatprep.mubr.f32.mxu0 0.0
        %290 = vmatmul.mubr.f32.gmra.mxu0 %v194
        %v291 = vpop.f32.mrf.mxu0
        %v292 = vadd.f32 0.0, %v291
        %v293 = vpop.f32.mrf.mxu0
        %294 = vmatprep.mubr.f32.mxu0 0.0
        %295 = vmatmul.mubr.f32.gmra.mxu0 %v197
        %v296 = vpop.f32.mrf.mxu0
        %v297 = vadd.f32 0.0, %v296
        %v298 = vpop.f32.mrf.mxu0
        %299 = vmatprep.mubr.f32.mxu0 0.0
        %300 = vmatmul.mubr.f32.gmra.mxu0 %v200
        %v301 = vpop.f32.mrf.mxu0
        %v302 = vadd.f32 0.0, %v301
        %v303 = vpop.f32.mrf.mxu0
        %304 = vmatprep.mubr.f32.mxu0 0.0
        %305 = vmatmul.mubr.f32.gmra.mxu0 %v203
        %v306 = vpop.f32.mrf.mxu0
        %v307 = vadd.f32 0.0, %v306
        %v308 = vpop.f32.mrf.mxu0
        %309 = vdwg.mxu0
        %v318 = vcombine.high %v272, %v272
        %v320 = vunpack.c.l.s4 1983009808
        %v321 = vunpack.c.0.s8 %v320
        %v322 = vlaneseq
        %v323 = vshrl.u32 %v322, 7
        %v324 = vsub.s32 %v321, %v323
        %v325 = vrot.slane %v272, %v324
        %v327 = vunpack.c.l.s4 1983009808
        %v328 = vunpack.c.0.s8 %v327
        %v329 = vlaneseq
        %v330 = vshrl.u32 %v329, 7
        %v331 = vsub.s32 %v328, %v330
        %v332 = vrot.slane %v318, %v331
        %v333 = vcombine.high %v325, %v325
        %v334 = vcombine.high %v332, %v332
        %v335 = vcombine.high %v277, %v277
        %v337 = vunpack.c.l.s4 1983009808
        %v338 = vunpack.c.0.s8 %v337
        %v339 = vlaneseq
        %v340 = vshrl.u32 %v339, 7
        %v341 = vsub.s32 %v338, %v340
        %v342 = vrot.slane %v277, %v341
        %v344 = vunpack.c.l.s4 1983009808
        %v345 = vunpack.c.0.s8 %v344
        %v346 = vlaneseq
        %v347 = vshrl.u32 %v346, 7
        %v348 = vsub.s32 %v345, %v347
        %v349 = vrot.slane %v335, %v348
        %v350 = vcombine.high %v342, %v342
        %v351 = vcombine.high %v349, %v349
        %v352 = vcombine.high %v282, %v282
        %v354 = vunpack.c.l.s4 1983009808
        %v355 = vunpack.c.0.s8 %v354
        %v356 = vlaneseq
        %v357 = vshrl.u32 %v356, 7
        %v358 = vsub.s32 %v355, %v357
        %v359 = vrot.slane %v282, %v358
        %v361 = vunpack.c.l.s4 1983009808
        %v362 = vunpack.c.0.s8 %v361
        %v363 = vlaneseq
        %v364 = vshrl.u32 %v363, 7
        %v365 = vsub.s32 %v362, %v364
        %v366 = vrot.slane %v352, %v365
        %v367 = vcombine.high %v359, %v359
        %v368 = vcombine.high %v366, %v366
        %v369 = vcombine.high %v287, %v287
        %v371 = vunpack.c.l.s4 1983009808
        %v372 = vunpack.c.0.s8 %v371
        %v373 = vlaneseq
        %v374 = vshrl.u32 %v373, 7
        %v375 = vsub.s32 %v372, %v374
        %v376 = vrot.slane %v287, %v375
        %v378 = vunpack.c.l.s4 1983009808
        %v379 = vunpack.c.0.s8 %v378
        %v380 = vlaneseq
        %v381 = vshrl.u32 %v380, 7
        %v382 = vsub.s32 %v379, %v381
        %v383 = vrot.slane %v369, %v382
        %v384 = vcombine.high %v376, %v376
        %v385 = vcombine.high %v383, %v383
        %v386 = vcombine.high %v292, %v292
        %v388 = vunpack.c.l.s4 1983009808
        %v389 = vunpack.c.0.s8 %v388
        %v390 = vlaneseq
        %v391 = vshrl.u32 %v390, 7
        %v392 = vsub.s32 %v389, %v391
        %v393 = vrot.slane %v292, %v392
        %v395 = vunpack.c.l.s4 1983009808
        %v396 = vunpack.c.0.s8 %v395
        %v397 = vlaneseq
        %v398 = vshrl.u32 %v397, 7
        %v399 = vsub.s32 %v396, %v398
        %v400 = vrot.slane %v386, %v399
        %v401 = vcombine.high %v393, %v393
        %v402 = vcombine.high %v400, %v400
        %v403 = vcombine.high %v297, %v297
        %v405 = vunpack.c.l.s4 1983009808
        %v406 = vunpack.c.0.s8 %v405
        %v407 = vlaneseq
        %v408 = vshrl.u32 %v407, 7
        %v409 = vsub.s32 %v406, %v408
        %v410 = vrot.slane %v297, %v409
        %v412 = vunpack.c.l.s4 1983009808
        %v413 = vunpack.c.0.s8 %v412
        %v414 = vlaneseq
        %v415 = vshrl.u32 %v414, 7
        %v416 = vsub.s32 %v413, %v415
        %v417 = vrot.slane %v403, %v416
        %v418 = vcombine.high %v410, %v410
        %v419 = vcombine.high %v417, %v417
        %v420 = vcombine.high %v302, %v302
        %v422 = vunpack.c.l.s4 1983009808
        %v423 = vunpack.c.0.s8 %v422
        %v424 = vlaneseq
        %v425 = vshrl.u32 %v424, 7
        %v426 = vsub.s32 %v423, %v425
        %v427 = vrot.slane %v302, %v426
        %v429 = vunpack.c.l.s4 1983009808
        %v430 = vunpack.c.0.s8 %v429
        %v431 = vlaneseq
        %v432 = vshrl.u32 %v431, 7
        %v433 = vsub.s32 %v430, %v432
        %v434 = vrot.slane %v420, %v433
        %v435 = vcombine.high %v427, %v427
        %v436 = vcombine.high %v434, %v434
        %v437 = vcombine.high %v307, %v307
        %v439 = vunpack.c.l.s4 1983009808
        %v440 = vunpack.c.0.s8 %v439
        %v441 = vlaneseq
        %v442 = vshrl.u32 %v441, 7
        %v443 = vsub.s32 %v440, %v442
        %v444 = vrot.slane %v307, %v443
        %v446 = vunpack.c.l.s4 1983009808
        %v447 = vunpack.c.0.s8 %v446
        %v448 = vlaneseq
        %v449 = vshrl.u32 %v448, 7
        %v450 = vsub.s32 %v447, %v449
        %v451 = vrot.slane %v437, %v450
        %v452 = vcombine.high %v444, %v444
        %v453 = vcombine.high %v451, %v451
        %v454 = vlaneseq
        %v455 = vshrl.u32 %v454, 7
        %v456 = vsub.s32 0, %v455
        %v457 = vrot.slane %v325, %v456
        %v458 = vlaneseq
        %v459 = vshrl.u32 %v458, 7
        %v460 = vsub.s32 0, %v459
        %v461 = vrot.slane %v333, %v460
        %v462 = vlaneseq
        %v463 = vshrl.u32 %v462, 7
        %v464 = vsub.s32 0, %v463
        %v465 = vrot.slane %v332, %v464
        %v466 = vlaneseq
        %v467 = vshrl.u32 %v466, 7
        %v468 = vsub.s32 0, %v467
        %v469 = vrot.slane %v334, %v468
        %v470 = vlaneseq
        %v471 = vshrl.u32 %v470, 7
        %v472 = vsub.s32 0, %v471
        %v473 = vrot.slane %v342, %v472
        %v474 = vlaneseq
        %v475 = vshrl.u32 %v474, 7
        %v476 = vsub.s32 0, %v475
        %v477 = vrot.slane %v350, %v476
        %v478 = vlaneseq
        %v479 = vshrl.u32 %v478, 7
        %v480 = vsub.s32 0, %v479
        %v481 = vrot.slane %v349, %v480
        %v482 = vlaneseq
        %v483 = vshrl.u32 %v482, 7
        %v484 = vsub.s32 0, %v483
        %v485 = vrot.slane %v351, %v484
        %v486 = vlaneseq
        %v487 = vshrl.u32 %v486, 7
        %v488 = vsub.s32 0, %v487
        %v489 = vrot.slane %v359, %v488
        %v490 = vlaneseq
        %v491 = vshrl.u32 %v490, 7
        %v492 = vsub.s32 0, %v491
        %v493 = vrot.slane %v367, %v492
        %v494 = vlaneseq
        %v495 = vshrl.u32 %v494, 7
        %v496 = vsub.s32 0, %v495
        %v497 = vrot.slane %v366, %v496
        %v498 = vlaneseq
        %v499 = vshrl.u32 %v498, 7
        %v500 = vsub.s32 0, %v499
        %v501 = vrot.slane %v368, %v500
        %v502 = vlaneseq
        %v503 = vshrl.u32 %v502, 7
        %v504 = vsub.s32 0, %v503
        %v505 = vrot.slane %v376, %v504
        %v506 = vlaneseq
        %v507 = vshrl.u32 %v506, 7
        %v508 = vsub.s32 0, %v507
        %v509 = vrot.slane %v384, %v508
        %v510 = vlaneseq
        %v511 = vshrl.u32 %v510, 7
        %v512 = vsub.s32 0, %v511
        %v513 = vrot.slane %v383, %v512
        %v514 = vlaneseq
        %v515 = vshrl.u32 %v514, 7
        %v516 = vsub.s32 0, %v515
        %v517 = vrot.slane %v385, %v516
        %v518 = vlaneseq
        %v519 = vshrl.u32 %v518, 7
        %v520 = vsub.s32 0, %v519
        %v521 = vrot.slane %v393, %v520
        %v522 = vlaneseq
        %v523 = vshrl.u32 %v522, 7
        %v524 = vsub.s32 0, %v523
        %v525 = vrot.slane %v401, %v524
        %v526 = vlaneseq
        %v527 = vshrl.u32 %v526, 7
        %v528 = vsub.s32 0, %v527
        %v529 = vrot.slane %v400, %v528
        %v530 = vlaneseq
        %v531 = vshrl.u32 %v530, 7
        %v532 = vsub.s32 0, %v531
        %v533 = vrot.slane %v402, %v532
        %v534 = vlaneseq
        %v535 = vshrl.u32 %v534, 7
        %v536 = vsub.s32 0, %v535
        %v537 = vrot.slane %v410, %v536
        %v538 = vlaneseq
        %v539 = vshrl.u32 %v538, 7
        %v540 = vsub.s32 0, %v539
        %v541 = vrot.slane %v418, %v540
        %v542 = vlaneseq
        %v543 = vshrl.u32 %v542, 7
        %v544 = vsub.s32 0, %v543
        %v545 = vrot.slane %v417, %v544
        %v546 = vlaneseq
        %v547 = vshrl.u32 %v546, 7
        %v548 = vsub.s32 0, %v547
        %v549 = vrot.slane %v419, %v548
        %v550 = vlaneseq
        %v551 = vshrl.u32 %v550, 7
        %v552 = vsub.s32 0, %v551
        %v553 = vrot.slane %v427, %v552
        %v554 = vlaneseq
        %v555 = vshrl.u32 %v554, 7
        %v556 = vsub.s32 0, %v555
        %v557 = vrot.slane %v435, %v556
        %v558 = vlaneseq
        %v559 = vshrl.u32 %v558, 7
        %v560 = vsub.s32 0, %v559
        %v561 = vrot.slane %v434, %v560
        %v562 = vlaneseq
        %v563 = vshrl.u32 %v562, 7
        %v564 = vsub.s32 0, %v563
        %v565 = vrot.slane %v436, %v564
        %v566 = vlaneseq
        %v567 = vshrl.u32 %v566, 7
        %v568 = vsub.s32 0, %v567
        %v569 = vrot.slane %v444, %v568
        %v570 = vlaneseq
        %v571 = vshrl.u32 %v570, 7
        %v572 = vsub.s32 0, %v571
        %v573 = vrot.slane %v452, %v572
        %v574 = vlaneseq
        %v575 = vshrl.u32 %v574, 7
        %v576 = vsub.s32 0, %v575
        %v577 = vrot.slane %v451, %v576
        %v578 = vlaneseq
        %v579 = vshrl.u32 %v578, 7
        %v580 = vsub.s32 0, %v579
        %v581 = vrot.slane %v453, %v580
        %vm582 = vcmask 1041409
        %v583 = vsel %vm582, %v461, %v457
        %vm584 = vcmask 1042434
        %v585 = vsel %vm584, %v465, %v583
        %vm586 = vcmask 1043459
        %v587 = vsel %vm586, %v469, %v585
        %vm588 = vcmask 1044484
        %v589 = vsel %vm588, %v473, %v587
        %vm590 = vcmask 1045509
        %v591 = vsel %vm590, %v477, %v589
        %vm592 = vcmask 1046534
        %v593 = vsel %vm592, %v481, %v591
        %vm594 = vcmask 1047559
        %v595 = vsel %vm594, %v485, %v593
        %v596 = vsel %vm582, %v493, %v489
        %v597 = vsel %vm584, %v497, %v596
        %v598 = vsel %vm586, %v501, %v597
        %v599 = vsel %vm588, %v505, %v598
        %v600 = vsel %vm590, %v509, %v599
        %v601 = vsel %vm592, %v513, %v600
        %v602 = vsel %vm594, %v517, %v601
        %v603 = vsel %vm582, %v525, %v521
        %v604 = vsel %vm584, %v529, %v603
        %v605 = vsel %vm586, %v533, %v604
        %v606 = vsel %vm588, %v537, %v605
        %v607 = vsel %vm590, %v541, %v606
        %v608 = vsel %vm592, %v545, %v607
        %v609 = vsel %vm594, %v549, %v608
        %v610 = vsel %vm582, %v557, %v553
        %v611 = vsel %vm584, %v561, %v610
        %v612 = vsel %vm586, %v565, %v611
        %v613 = vsel %vm588, %v569, %v612
        %v614 = vsel %vm590, %v573, %v613
        %v615 = vsel %vm592, %v577, %v614
        %v616 = vsel %vm594, %v581, %v615
        %vm621 = vcmask 64512
        %622 = vst.msk [vmem:[%s161] sm:$0xff] %vm621, %v595
        %623 = vst.msk [vmem:[%s161 + $0x8] sm:$0xff] %vm621, %v602
        %624 = vst.msk [vmem:[%s161 + $0x10] sm:$0xff] %vm621, %v609
        %625 = vst.msk [vmem:[%s161 + $0x18] sm:$0xff] %vm621, %v616
        %v626 = vlaneseq
        %v627 = vshrl.u32 %v626, 7
        %v628 = vsub.s32 1, %v627
        %v629 = vrot.slane %v325, %v628
        %v630 = vlaneseq
        %v631 = vshrl.u32 %v630, 7
        %v632 = vsub.s32 1, %v631
        %v633 = vrot.slane %v333, %v632
        %v634 = vlaneseq
        %v635 = vshrl.u32 %v634, 7
        %v636 = vsub.s32 1, %v635
        %v637 = vrot.slane %v332, %v636
        %v638 = vlaneseq
        %v639 = vshrl.u32 %v638, 7
        %v640 = vsub.s32 1, %v639
        %v641 = vrot.slane %v334, %v640
        %v642 = vlaneseq
        %v643 = vshrl.u32 %v642, 7
        %v644 = vsub.s32 1, %v643
        %v645 = vrot.slane %v342, %v644
        %v646 = vlaneseq
        %v647 = vshrl.u32 %v646, 7
        %v648 = vsub.s32 1, %v647
        %v649 = vrot.slane %v350, %v648
        %v650 = vlaneseq
        %v651 = vshrl.u32 %v650, 7
        %v652 = vsub.s32 1, %v651
        %v653 = vrot.slane %v349, %v652
        %v654 = vlaneseq
        %v655 = vshrl.u32 %v654, 7
        %v656 = vsub.s32 1, %v655
        %v657 = vrot.slane %v351, %v656
        %v658 = vlaneseq
        %v659 = vshrl.u32 %v658, 7
        %v660 = vsub.s32 1, %v659
        %v661 = vrot.slane %v359, %v660
        %v662 = vlaneseq
        %v663 = vshrl.u32 %v662, 7
        %v664 = vsub.s32 1, %v663
        %v665 = vrot.slane %v367, %v664
        %v666 = vlaneseq
        %v667 = vshrl.u32 %v666, 7
        %v668 = vsub.s32 1, %v667
        %v669 = vrot.slane %v366, %v668
        %v670 = vlaneseq
        %v671 = vshrl.u32 %v670, 7
        %v672 = vsub.s32 1, %v671
        %v673 = vrot.slane %v368, %v672
        %v674 = vlaneseq
        %v675 = vshrl.u32 %v674, 7
        %v676 = vsub.s32 1, %v675
        %v677 = vrot.slane %v376, %v676
        %v678 = vlaneseq
        %v679 = vshrl.u32 %v678, 7
        %v680 = vsub.s32 1, %v679
        %v681 = vrot.slane %v384, %v680
        %v682 = vlaneseq
        %v683 = vshrl.u32 %v682, 7
        %v684 = vsub.s32 1, %v683
        %v685 = vrot.slane %v383, %v684
        %v686 = vlaneseq
        %v687 = vshrl.u32 %v686, 7
        %v688 = vsub.s32 1, %v687
        %v689 = vrot.slane %v385, %v688
        %v690 = vlaneseq
        %v691 = vshrl.u32 %v690, 7
        %v692 = vsub.s32 1, %v691
        %v693 = vrot.slane %v393, %v692
        %v694 = vlaneseq
        %v695 = vshrl.u32 %v694, 7
        %v696 = vsub.s32 1, %v695
        %v697 = vrot.slane %v401, %v696
        %v698 = vlaneseq
        %v699 = vshrl.u32 %v698, 7
        %v700 = vsub.s32 1, %v699
        %v701 = vrot.slane %v400, %v700
        %v702 = vlaneseq
        %v703 = vshrl.u32 %v702, 7
        %v704 = vsub.s32 1, %v703
        %v705 = vrot.slane %v402, %v704
        %v706 = vlaneseq
        %v707 = vshrl.u32 %v706, 7
        %v708 = vsub.s32 1, %v707
        %v709 = vrot.slane %v410, %v708
        %v710 = vlaneseq
        %v711 = vshrl.u32 %v710, 7
        %v712 = vsub.s32 1, %v711
        %v713 = vrot.slane %v418, %v712
        %v714 = vlaneseq
        %v715 = vshrl.u32 %v714, 7
        %v716 = vsub.s32 1, %v715
        %v717 = vrot.slane %v417, %v716
        %v718 = vlaneseq
        %v719 = vshrl.u32 %v718, 7
        %v720 = vsub.s32 1, %v719
        %v721 = vrot.slane %v419, %v720
        %v722 = vlaneseq
        %v723 = vshrl.u32 %v722, 7
        %v724 = vsub.s32 1, %v723
        %v725 = vrot.slane %v427, %v724
        %v726 = vlaneseq
        %v727 = vshrl.u32 %v726, 7
        %v728 = vsub.s32 1, %v727
        %v729 = vrot.slane %v435, %v728
        %v730 = vlaneseq
        %v731 = vshrl.u32 %v730, 7
        %v732 = vsub.s32 1, %v731
        %v733 = vrot.slane %v434, %v732
        %v734 = vlaneseq
        %v735 = vshrl.u32 %v734, 7
        %v736 = vsub.s32 1, %v735
        %v737 = vrot.slane %v436, %v736
        %v738 = vlaneseq
        %v739 = vshrl.u32 %v738, 7
        %v740 = vsub.s32 1, %v739
        %v741 = vrot.slane %v444, %v740
        %v742 = vlaneseq
        %v743 = vshrl.u32 %v742, 7
        %v744 = vsub.s32 1, %v743
        %v745 = vrot.slane %v452, %v744
        %v746 = vlaneseq
        %v747 = vshrl.u32 %v746, 7
        %v748 = vsub.s32 1, %v747
        %v749 = vrot.slane %v451, %v748
        %v750 = vlaneseq
        %v751 = vshrl.u32 %v750, 7
        %v752 = vsub.s32 1, %v751
        %v753 = vrot.slane %v453, %v752
        %v754 = vsel %vm584, %v633, %v629
        %v755 = vsel %vm586, %v637, %v754
        %v756 = vsel %vm588, %v641, %v755
        %v757 = vsel %vm590, %v645, %v756
        %v758 = vsel %vm592, %v649, %v757
        %v759 = vsel %vm594, %v653, %v758
        %v760 = vsel %vm584, %v665, %v661
        %v761 = vsel %vm586, %v669, %v760
        %v762 = vsel %vm588, %v673, %v761
        %v763 = vsel %vm590, %v677, %v762
        %v764 = vsel %vm592, %v681, %v763
        %v765 = vsel %vm594, %v685, %v764
        %v766 = vsel %vm584, %v697, %v693
        %v767 = vsel %vm586, %v701, %v766
        %v768 = vsel %vm588, %v705, %v767
        %v769 = vsel %vm590, %v709, %v768
        %v770 = vsel %vm592, %v713, %v769
        %v771 = vsel %vm594, %v717, %v770
        %v772 = vsel %vm584, %v729, %v725
        %v773 = vsel %vm586, %v733, %v772
        %v774 = vsel %vm588, %v737, %v773
        %v775 = vsel %vm590, %v741, %v774
        %v776 = vsel %vm592, %v745, %v775
        %v777 = vsel %vm594, %v749, %v776
        %s786 = scalar_lea.vmem %s161, 64
        %vm787 = vcmask 64513
        %788 = vst.msk [vmem:[%s786 - $0x1] sm:$0xfe] %vm787, %v759
        %vm789 = vcmask 57344
        %790 = vst.msk [vmem:[%s786 + $0x7] sm:$0x1] %vm789, %v657
        %791 = vst.msk [vmem:[%s786 + $0x7] sm:$0xfe] %vm787, %v765
        %792 = vst.msk [vmem:[%s786 + $0xf] sm:$0x1] %vm789, %v689
        %793 = vst.msk [vmem:[%s786 + $0xf] sm:$0xfe] %vm787, %v771
        %794 = vst.msk [vmem:[%s786 + $0x17] sm:$0x1] %vm789, %v721
        %795 = vst.msk [vmem:[%s786 + $0x17] sm:$0xfe] %vm787, %v777
        %796 = vst.msk [vmem:[%s786 + $0x1f] sm:$0x1] %vm789, %v753
        %v797 = vadd.s32 %v175, 1
        %vm798 = vcmp.eq.s32.totalorder %v171, %v797
        %vm799 = vcmp.eq.s32.totalorder %v172, %v797
        %v800 = vsel %vm798, 1.0, 0.0
        %v801 = vsel %vm799, 1.0, 0.0
        %802 = vmatprep.subr.mxu0 0.0
        %803 = vmatpush1.msra.mxu0 0.0
        %804 = vmatprep.subr.mxu0 0.0
        %805 = vmatpush1.msra.mxu0 0.0
        %806 = vmatprep.subr.mxu0 0.0
        %807 = vmatpush1.msra.mxu0 0.0
        %808 = vmatprep.subr.mxu0 0.0
        %809 = vmatpush1.msra.mxu0 0.0
        %810 = vmatprep.subr.mxu0 0.0
        %811 = vmatpush1.msra.mxu0 0.0
        %812 = vmatprep.subr.mxu0 0.0
        %813 = vmatpush1.msra.mxu0 0.0
        %814 = vmatprep.subr.mxu0 0.0
        %815 = vmatpush1.msra.mxu0 0.0
        %816 = vmatprep.subr.mxu0 0.0
        %817 = vmatpush1.msra.mxu0 0.0
        %818 = vmatprep.subr.mxu0 0.0
        %819 = vmatpush1.msra.mxu0 0.0
        %820 = vmatprep.subr.mxu0 0.0
        %821 = vmatpush1.msra.mxu0 0.0
        %822 = vmatprep.subr.mxu0 0.0
        %823 = vmatpush1.msra.mxu0 0.0
        %824 = vmatprep.subr.mxu0 0.0
        %825 = vmatpush1.msra.mxu0 0.0
        %826 = vmatprep.subr.mxu0 0.0
        %827 = vmatpush1.msra.mxu0 0.0
        %828 = vmatprep.subr.mxu0 0.0
        %829 = vmatpush1.msra.mxu0 0.0
        %830 = vmatprep.subr.mxu0 0.0
        %831 = vmatpush1.msra.mxu0 %v801
        %832 = vmatprep.subr.mxu0 0.0
        %833 = vmatpush1.msra.mxu0 %v800
        %834 = vmatprep.subr.mxu0 0.0
        %835 = vmatpush2.msra.mxu0 0.0
        %836 = vmatprep.subr.mxu0 0.0
        %837 = vmatpush2.msra.mxu0 0.0
        %838 = vmatprep.subr.mxu0 0.0
        %839 = vmatpush2.msra.mxu0 0.0
        %840 = vmatprep.subr.mxu0 0.0
        %841 = vmatpush2.msra.mxu0 0.0
        %842 = vmatprep.subr.mxu0 0.0
        %843 = vmatpush2.msra.mxu0 0.0
        %844 = vmatprep.subr.mxu0 0.0
        %845 = vmatpush2.msra.mxu0 0.0
        %846 = vmatprep.subr.mxu0 0.0
        %847 = vmatpush2.msra.mxu0 0.0
        %848 = vmatprep.subr.mxu0 0.0
        %849 = vmatpush2.msra.mxu0 0.0
        %850 = vmatprep.subr.mxu0 0.0
        %851 = vmatpush2.msra.mxu0 0.0
        %852 = vmatprep.subr.mxu0 0.0
        %853 = vmatpush2.msra.mxu0 0.0
        %854 = vmatprep.subr.mxu0 0.0
        %855 = vmatpush2.msra.mxu0 0.0
        %856 = vmatprep.subr.mxu0 0.0
        %857 = vmatpush2.msra.mxu0 0.0
        %858 = vmatprep.subr.mxu0 0.0
        %859 = vmatpush2.msra.mxu0 0.0
        %860 = vmatprep.subr.mxu0 0.0
        %861 = vmatpush2.msra.mxu0 0.0
        %862 = vmatprep.subr.mxu0 0.0
        %863 = vmatpush2.msra.mxu0 0.0
        %864 = vmatprep.subr.mxu0 0.0
        %865 = vmatpush2.msra.mxu0 0.0
        %866 = vmatprep.mubr.f32.mxu0 0.0
        %867 = vmatmul.mubr.f32.gmra.mxu0 %v182
        %v868 = vpop.f32.mrf.mxu0
        %v869 = vadd.f32 0.0, %v868
        %v870 = vpop.f32.mrf.mxu0
        %871 = vmatprep.mubr.f32.mxu0 0.0
        %872 = vmatmul.mubr.f32.gmra.mxu0 %v185
        %v873 = vpop.f32.mrf.mxu0
        %v874 = vadd.f32 0.0, %v873
        %v875 = vpop.f32.mrf.mxu0
        %876 = vmatprep.mubr.f32.mxu0 0.0
        %877 = vmatmul.mubr.f32.gmra.mxu0 %v188
        %v878 = vpop.f32.mrf.mxu0
        %v879 = vadd.f32 0.0, %v878
        %v880 = vpop.f32.mrf.mxu0
        %881 = vmatprep.mubr.f32.mxu0 0.0
        %882 = vmatmul.mubr.f32.gmra.mxu0 %v191
        %v883 = vpop.f32.mrf.mxu0
        %v884 = vadd.f32 0.0, %v883
        %v885 = vpop.f32.mrf.mxu0
        %886 = vmatprep.mubr.f32.mxu0 0.0
        %887 = vmatmul.mubr.f32.gmra.mxu0 %v194
        %v888 = vpop.f32.mrf.mxu0
        %v889 = vadd.f32 0.0, %v888
        %v890 = vpop.f32.mrf.mxu0
        %891 = vmatprep.mubr.f32.mxu0 0.0
        %892 = vmatmul.mubr.f32.gmra.mxu0 %v197
        %v893 = vpop.f32.mrf.mxu0
        %v894 = vadd.f32 0.0, %v893
        %v895 = vpop.f32.mrf.mxu0
        %896 = vmatprep.mubr.f32.mxu0 0.0
        %897 = vmatmul.mubr.f32.gmra.mxu0 %v200
        %v898 = vpop.f32.mrf.mxu0
        %v899 = vadd.f32 0.0, %v898
        %v900 = vpop.f32.mrf.mxu0
        %901 = vmatprep.mubr.f32.mxu0 0.0
        %902 = vmatmul.mubr.f32.gmra.mxu0 %v203
        %v903 = vpop.f32.mrf.mxu0
        %v904 = vadd.f32 0.0, %v903
        %v905 = vpop.f32.mrf.mxu0
        %906 = vdwg.mxu0
        %v915 = vcombine.high %v869, %v869
        %v917 = vunpack.c.l.s4 1983009808
        %v918 = vunpack.c.0.s8 %v917
        %v919 = vlaneseq
        %v920 = vshrl.u32 %v919, 7
        %v921 = vsub.s32 %v918, %v920
        %v922 = vrot.slane %v869, %v921
        %v924 = vunpack.c.l.s4 1983009808
        %v925 = vunpack.c.0.s8 %v924
        %v926 = vlaneseq
        %v927 = vshrl.u32 %v926, 7
        %v928 = vsub.s32 %v925, %v927
        %v929 = vrot.slane %v915, %v928
        %v930 = vcombine.high %v922, %v922
        %v931 = vcombine.high %v929, %v929
        %v932 = vcombine.high %v874, %v874
        %v934 = vunpack.c.l.s4 1983009808
        %v935 = vunpack.c.0.s8 %v934
        %v936 = vlaneseq
        %v937 = vshrl.u32 %v936, 7
        %v938 = vsub.s32 %v935, %v937
        %v939 = vrot.slane %v874, %v938
        %v941 = vunpack.c.l.s4 1983009808
        %v942 = vunpack.c.0.s8 %v941
        %v943 = vlaneseq
        %v944 = vshrl.u32 %v943, 7
        %v945 = vsub.s32 %v942, %v944
        %v946 = vrot.slane %v932, %v945
        %v947 = vcombine.high %v939, %v939
        %v948 = vcombine.high %v946, %v946
        %v949 = vcombine.high %v879, %v879
        %v951 = vunpack.c.l.s4 1983009808
        %v952 = vunpack.c.0.s8 %v951
        %v953 = vlaneseq
        %v954 = vshrl.u32 %v953, 7
        %v955 = vsub.s32 %v952, %v954
        %v956 = vrot.slane %v879, %v955
        %v958 = vunpack.c.l.s4 1983009808
        %v959 = vunpack.c.0.s8 %v958
        %v960 = vlaneseq
        %v961 = vshrl.u32 %v960, 7
        %v962 = vsub.s32 %v959, %v961
        %v963 = vrot.slane %v949, %v962
        %v964 = vcombine.high %v956, %v956
        %v965 = vcombine.high %v963, %v963
        %v966 = vcombine.high %v884, %v884
        %v968 = vunpack.c.l.s4 1983009808
        %v969 = vunpack.c.0.s8 %v968
        %v970 = vlaneseq
        %v971 = vshrl.u32 %v970, 7
        %v972 = vsub.s32 %v969, %v971
        %v973 = vrot.slane %v884, %v972
        %v975 = vunpack.c.l.s4 1983009808
        %v976 = vunpack.c.0.s8 %v975
        %v977 = vlaneseq
        %v978 = vshrl.u32 %v977, 7
        %v979 = vsub.s32 %v976, %v978
        %v980 = vrot.slane %v966, %v979
        %v981 = vcombine.high %v973, %v973
        %v982 = vcombine.high %v980, %v980
        %v983 = vcombine.high %v889, %v889
        %v985 = vunpack.c.l.s4 1983009808
        %v986 = vunpack.c.0.s8 %v985
        %v987 = vlaneseq
        %v988 = vshrl.u32 %v987, 7
        %v989 = vsub.s32 %v986, %v988
        %v990 = vrot.slane %v889, %v989
        %v992 = vunpack.c.l.s4 1983009808
        %v993 = vunpack.c.0.s8 %v992
        %v994 = vlaneseq
        %v995 = vshrl.u32 %v994, 7
        %v996 = vsub.s32 %v993, %v995
        %v997 = vrot.slane %v983, %v996
        %v998 = vcombine.high %v990, %v990
        %v999 = vcombine.high %v997, %v997
        %v1000 = vcombine.high %v894, %v894
        %v1002 = vunpack.c.l.s4 1983009808
        %v1003 = vunpack.c.0.s8 %v1002
        %v1004 = vlaneseq
        %v1005 = vshrl.u32 %v1004, 7
        %v1006 = vsub.s32 %v1003, %v1005
        %v1007 = vrot.slane %v894, %v1006
        %v1009 = vunpack.c.l.s4 1983009808
        %v1010 = vunpack.c.0.s8 %v1009
        %v1011 = vlaneseq
        %v1012 = vshrl.u32 %v1011, 7
        %v1013 = vsub.s32 %v1010, %v1012
        %v1014 = vrot.slane %v1000, %v1013
        %v1015 = vcombine.high %v1007, %v1007
        %v1016 = vcombine.high %v1014, %v1014
        %v1017 = vcombine.high %v899, %v899
        %v1019 = vunpack.c.l.s4 1983009808
        %v1020 = vunpack.c.0.s8 %v1019
        %v1021 = vlaneseq
        %v1022 = vshrl.u32 %v1021, 7
        %v1023 = vsub.s32 %v1020, %v1022
        %v1024 = vrot.slane %v899, %v1023
        %v1026 = vunpack.c.l.s4 1983009808
        %v1027 = vunpack.c.0.s8 %v1026
        %v1028 = vlaneseq
        %v1029 = vshrl.u32 %v1028, 7
        %v1030 = vsub.s32 %v1027, %v1029
        %v1031 = vrot.slane %v1017, %v1030
        %v1032 = vcombine.high %v1024, %v1024
        %v1033 = vcombine.high %v1031, %v1031
        %v1034 = vcombine.high %v904, %v904
        %v1036 = vunpack.c.l.s4 1983009808
        %v1037 = vunpack.c.0.s8 %v1036
        %v1038 = vlaneseq
        %v1039 = vshrl.u32 %v1038, 7
        %v1040 = vsub.s32 %v1037, %v1039
        %v1041 = vrot.slane %v904, %v1040
        %v1043 = vunpack.c.l.s4 1983009808
        %v1044 = vunpack.c.0.s8 %v1043
        %v1045 = vlaneseq
        %v1046 = vshrl.u32 %v1045, 7
        %v1047 = vsub.s32 %v1044, %v1046
        %v1048 = vrot.slane %v1034, %v1047
        %v1049 = vcombine.high %v1041, %v1041
        %v1050 = vcombine.high %v1048, %v1048
        %v1051 = vlaneseq
        %v1052 = vshrl.u32 %v1051, 7
        %v1053 = vsub.s32 0, %v1052
        %v1054 = vrot.slane %v922, %v1053
        %v1055 = vlaneseq
        %v1056 = vshrl.u32 %v1055, 7
        %v1057 = vsub.s32 0, %v1056
        %v1058 = vrot.slane %v930, %v1057
        %v1059 = vlaneseq
        %v1060 = vshrl.u32 %v1059, 7
        %v1061 = vsub.s32 0, %v1060
        %v1062 = vrot.slane %v929, %v1061
        %v1063 = vlaneseq
        %v1064 = vshrl.u32 %v1063, 7
        %v1065 = vsub.s32 0, %v1064
        %v1066 = vrot.slane %v931, %v1065
        %v1067 = vlaneseq
        %v1068 = vshrl.u32 %v1067, 7
        %v1069 = vsub.s32 0, %v1068
        %v1070 = vrot.slane %v939, %v1069
        %v1071 = vlaneseq
        %v1072 = vshrl.u32 %v1071, 7
        %v1073 = vsub.s32 0, %v1072
        %v1074 = vrot.slane %v947, %v1073
        %v1075 = vlaneseq
        %v1076 = vshrl.u32 %v1075, 7
        %v1077 = vsub.s32 0, %v1076
        %v1078 = vrot.slane %v946, %v1077
        %v1079 = vlaneseq
        %v1080 = vshrl.u32 %v1079, 7
        %v1081 = vsub.s32 0, %v1080
        %v1082 = vrot.slane %v948, %v1081
        %v1083 = vlaneseq
        %v1084 = vshrl.u32 %v1083, 7
        %v1085 = vsub.s32 0, %v1084
        %v1086 = vrot.slane %v956, %v1085
        %v1087 = vlaneseq
        %v1088 = vshrl.u32 %v1087, 7
        %v1089 = vsub.s32 0, %v1088
        %v1090 = vrot.slane %v964, %v1089
        %v1091 = vlaneseq
        %v1092 = vshrl.u32 %v1091, 7
        %v1093 = vsub.s32 0, %v1092
        %v1094 = vrot.slane %v963, %v1093
        %v1095 = vlaneseq
        %v1096 = vshrl.u32 %v1095, 7
        %v1097 = vsub.s32 0, %v1096
        %v1098 = vrot.slane %v965, %v1097
        %v1099 = vlaneseq
        %v1100 = vshrl.u32 %v1099, 7
        %v1101 = vsub.s32 0, %v1100
        %v1102 = vrot.slane %v973, %v1101
        %v1103 = vlaneseq
        %v1104 = vshrl.u32 %v1103, 7
        %v1105 = vsub.s32 0, %v1104
        %v1106 = vrot.slane %v981, %v1105
        %v1107 = vlaneseq
        %v1108 = vshrl.u32 %v1107, 7
        %v1109 = vsub.s32 0, %v1108
        %v1110 = vrot.slane %v980, %v1109
        %v1111 = vlaneseq
        %v1112 = vshrl.u32 %v1111, 7
        %v1113 = vsub.s32 0, %v1112
        %v1114 = vrot.slane %v982, %v1113
        %v1115 = vlaneseq
        %v1116 = vshrl.u32 %v1115, 7
        %v1117 = vsub.s32 0, %v1116
        %v1118 = vrot.slane %v990, %v1117
        %v1119 = vlaneseq
        %v1120 = vshrl.u32 %v1119, 7
        %v1121 = vsub.s32 0, %v1120
        %v1122 = vrot.slane %v998, %v1121
        %v1123 = vlaneseq
        %v1124 = vshrl.u32 %v1123, 7
        %v1125 = vsub.s32 0, %v1124
        %v1126 = vrot.slane %v997, %v1125
        %v1127 = vlaneseq
        %v1128 = vshrl.u32 %v1127, 7
        %v1129 = vsub.s32 0, %v1128
        %v1130 = vrot.slane %v999, %v1129
        %v1131 = vlaneseq
        %v1132 = vshrl.u32 %v1131, 7
        %v1133 = vsub.s32 0, %v1132
        %v1134 = vrot.slane %v1007, %v1133
        %v1135 = vlaneseq
        %v1136 = vshrl.u32 %v1135, 7
        %v1137 = vsub.s32 0, %v1136
        %v1138 = vrot.slane %v1015, %v1137
        %v1139 = vlaneseq
        %v1140 = vshrl.u32 %v1139, 7
        %v1141 = vsub.s32 0, %v1140
        %v1142 = vrot.slane %v1014, %v1141
        %v1143 = vlaneseq
        %v1144 = vshrl.u32 %v1143, 7
        %v1145 = vsub.s32 0, %v1144
        %v1146 = vrot.slane %v1016, %v1145
        %v1147 = vlaneseq
        %v1148 = vshrl.u32 %v1147, 7
        %v1149 = vsub.s32 0, %v1148
        %v1150 = vrot.slane %v1024, %v1149
        %v1151 = vlaneseq
        %v1152 = vshrl.u32 %v1151, 7
        %v1153 = vsub.s32 0, %v1152
        %v1154 = vrot.slane %v1032, %v1153
        %v1155 = vlaneseq
        %v1156 = vshrl.u32 %v1155, 7
        %v1157 = vsub.s32 0, %v1156
        %v1158 = vrot.slane %v1031, %v1157
        %v1159 = vlaneseq
        %v1160 = vshrl.u32 %v1159, 7
        %v1161 = vsub.s32 0, %v1160
        %v1162 = vrot.slane %v1033, %v1161
        %v1163 = vlaneseq
        %v1164 = vshrl.u32 %v1163, 7
        %v1165 = vsub.s32 0, %v1164
        %v1166 = vrot.slane %v1041, %v1165
        %v1167 = vlaneseq
        %v1168 = vshrl.u32 %v1167, 7
        %v1169 = vsub.s32 0, %v1168
        %v1170 = vrot.slane %v1049, %v1169
        %v1171 = vlaneseq
        %v1172 = vshrl.u32 %v1171, 7
        %v1173 = vsub.s32 0, %v1172
        %v1174 = vrot.slane %v1048, %v1173
        %v1175 = vlaneseq
        %v1176 = vshrl.u32 %v1175, 7
        %v1177 = vsub.s32 0, %v1176
        %v1178 = vrot.slane %v1050, %v1177
        %v1179 = vsel %vm582, %v1058, %v1054
        %v1180 = vsel %vm584, %v1062, %v1179
        %v1181 = vsel %vm586, %v1066, %v1180
        %v1182 = vsel %vm588, %v1070, %v1181
        %v1183 = vsel %vm590, %v1074, %v1182
        %v1184 = vsel %vm592, %v1078, %v1183
        %v1185 = vsel %vm594, %v1082, %v1184
        %v1186 = vsel %vm582, %v1090, %v1086
        %v1187 = vsel %vm584, %v1094, %v1186
        %v1188 = vsel %vm586, %v1098, %v1187
        %v1189 = vsel %vm588, %v1102, %v1188
        %v1190 = vsel %vm590, %v1106, %v1189
        %v1191 = vsel %vm592, %v1110, %v1190
        %v1192 = vsel %vm594, %v1114, %v1191
        %v1193 = vsel %vm582, %v1122, %v1118
        %v1194 = vsel %vm584, %v1126, %v1193
        %v1195 = vsel %vm586, %v1130, %v1194
        %v1196 = vsel %vm588, %v1134, %v1195
        %v1197 = vsel %vm590, %v1138, %v1196
        %v1198 = vsel %vm592, %v1142, %v1197
        %v1199 = vsel %vm594, %v1146, %v1198
        %v1200 = vsel %vm582, %v1154, %v1150
        %v1201 = vsel %vm584, %v1158, %v1200
        %v1202 = vsel %vm586, %v1162, %v1201
        %v1203 = vsel %vm588, %v1166, %v1202
        %v1204 = vsel %vm590, %v1170, %v1203
        %v1205 = vsel %vm592, %v1174, %v1204
        %v1206 = vsel %vm594, %v1178, %v1205
        %s1211 = scalar_lea.vmem %s161, 32
        %1212 = vst.msk [vmem:[%s1211] sm:$0xff] %vm621, %v1185
        %1213 = vst.msk [vmem:[%s1211 + $0x8] sm:$0xff] %vm621, %v1192
        %1214 = vst.msk [vmem:[%s1211 + $0x10] sm:$0xff] %vm621, %v1199
        %1215 = vst.msk [vmem:[%s1211 + $0x18] sm:$0xff] %vm621, %v1206
        %v1216 = vlaneseq
        %v1217 = vshrl.u32 %v1216, 7
        %v1218 = vsub.s32 1, %v1217
        %v1219 = vrot.slane %v922, %v1218
        %v1220 = vlaneseq
        %v1221 = vshrl.u32 %v1220, 7
        %v1222 = vsub.s32 1, %v1221
        %v1223 = vrot.slane %v930, %v1222
        %v1224 = vlaneseq
        %v1225 = vshrl.u32 %v1224, 7
        %v1226 = vsub.s32 1, %v1225
        %v1227 = vrot.slane %v929, %v1226
        %v1228 = vlaneseq
        %v1229 = vshrl.u32 %v1228, 7
        %v1230 = vsub.s32 1, %v1229
        %v1231 = vrot.slane %v931, %v1230
        %v1232 = vlaneseq
        %v1233 = vshrl.u32 %v1232, 7
        %v1234 = vsub.s32 1, %v1233
        %v1235 = vrot.slane %v939, %v1234
        %v1236 = vlaneseq
        %v1237 = vshrl.u32 %v1236, 7
        %v1238 = vsub.s32 1, %v1237
        %v1239 = vrot.slane %v947, %v1238
        %v1240 = vlaneseq
        %v1241 = vshrl.u32 %v1240, 7
        %v1242 = vsub.s32 1, %v1241
        %v1243 = vrot.slane %v946, %v1242
        %v1244 = vlaneseq
        %v1245 = vshrl.u32 %v1244, 7
        %v1246 = vsub.s32 1, %v1245
        %v1247 = vrot.slane %v948, %v1246
        %v1248 = vlaneseq
        %v1249 = vshrl.u32 %v1248, 7
        %v1250 = vsub.s32 1, %v1249
        %v1251 = vrot.slane %v956, %v1250
        %v1252 = vlaneseq
        %v1253 = vshrl.u32 %v1252, 7
        %v1254 = vsub.s32 1, %v1253
        %v1255 = vrot.slane %v964, %v1254
        %v1256 = vlaneseq
        %v1257 = vshrl.u32 %v1256, 7
        %v1258 = vsub.s32 1, %v1257
        %v1259 = vrot.slane %v963, %v1258
        %v1260 = vlaneseq
        %v1261 = vshrl.u32 %v1260, 7
        %v1262 = vsub.s32 1, %v1261
        %v1263 = vrot.slane %v965, %v1262
        %v1264 = vlaneseq
        %v1265 = vshrl.u32 %v1264, 7
        %v1266 = vsub.s32 1, %v1265
        %v1267 = vrot.slane %v973, %v1266
        %v1268 = vlaneseq
        %v1269 = vshrl.u32 %v1268, 7
        %v1270 = vsub.s32 1, %v1269
        %v1271 = vrot.slane %v981, %v1270
        %v1272 = vlaneseq
        %v1273 = vshrl.u32 %v1272, 7
        %v1274 = vsub.s32 1, %v1273
        %v1275 = vrot.slane %v980, %v1274
        %v1276 = vlaneseq
        %v1277 = vshrl.u32 %v1276, 7
        %v1278 = vsub.s32 1, %v1277
        %v1279 = vrot.slane %v982, %v1278
        %v1280 = vlaneseq
        %v1281 = vshrl.u32 %v1280, 7
        %v1282 = vsub.s32 1, %v1281
        %v1283 = vrot.slane %v990, %v1282
        %v1284 = vlaneseq
        %v1285 = vshrl.u32 %v1284, 7
        %v1286 = vsub.s32 1, %v1285
        %v1287 = vrot.slane %v998, %v1286
        %v1288 = vlaneseq
        %v1289 = vshrl.u32 %v1288, 7
        %v1290 = vsub.s32 1, %v1289
        %v1291 = vrot.slane %v997, %v1290
        %v1292 = vlaneseq
        %v1293 = vshrl.u32 %v1292, 7
        %v1294 = vsub.s32 1, %v1293
        %v1295 = vrot.slane %v999, %v1294
        %v1296 = vlaneseq
        %v1297 = vshrl.u32 %v1296, 7
        %v1298 = vsub.s32 1, %v1297
        %v1299 = vrot.slane %v1007, %v1298
        %v1300 = vlaneseq
        %v1301 = vshrl.u32 %v1300, 7
        %v1302 = vsub.s32 1, %v1301
        %v1303 = vrot.slane %v1015, %v1302
        %v1304 = vlaneseq
        %v1305 = vshrl.u32 %v1304, 7
        %v1306 = vsub.s32 1, %v1305
        %v1307 = vrot.slane %v1014, %v1306
        %v1308 = vlaneseq
        %v1309 = vshrl.u32 %v1308, 7
        %v1310 = vsub.s32 1, %v1309
        %v1311 = vrot.slane %v1016, %v1310
        %v1312 = vlaneseq
        %v1313 = vshrl.u32 %v1312, 7
        %v1314 = vsub.s32 1, %v1313
        %v1315 = vrot.slane %v1024, %v1314
        %v1316 = vlaneseq
        %v1317 = vshrl.u32 %v1316, 7
        %v1318 = vsub.s32 1, %v1317
        %v1319 = vrot.slane %v1032, %v1318
        %v1320 = vlaneseq
        %v1321 = vshrl.u32 %v1320, 7
        %v1322 = vsub.s32 1, %v1321
        %v1323 = vrot.slane %v1031, %v1322
        %v1324 = vlaneseq
        %v1325 = vshrl.u32 %v1324, 7
        %v1326 = vsub.s32 1, %v1325
        %v1327 = vrot.slane %v1033, %v1326
        %v1328 = vlaneseq
        %v1329 = vshrl.u32 %v1328, 7
        %v1330 = vsub.s32 1, %v1329
        %v1331 = vrot.slane %v1041, %v1330
        %v1332 = vlaneseq
        %v1333 = vshrl.u32 %v1332, 7
        %v1334 = vsub.s32 1, %v1333
        %v1335 = vrot.slane %v1049, %v1334
        %v1336 = vlaneseq
        %v1337 = vshrl.u32 %v1336, 7
        %v1338 = vsub.s32 1, %v1337
        %v1339 = vrot.slane %v1048, %v1338
        %v1340 = vlaneseq
        %v1341 = vshrl.u32 %v1340, 7
        %v1342 = vsub.s32 1, %v1341
        %v1343 = vrot.slane %v1050, %v1342
        %v1344 = vsel %vm584, %v1223, %v1219
        %v1345 = vsel %vm586, %v1227, %v1344
        %v1346 = vsel %vm588, %v1231, %v1345
        %v1347 = vsel %vm590, %v1235, %v1346
        %v1348 = vsel %vm592, %v1239, %v1347
        %v1349 = vsel %vm594, %v1243, %v1348
        %v1350 = vsel %vm584, %v1255, %v1251
        %v1351 = vsel %vm586, %v1259, %v1350
        %v1352 = vsel %vm588, %v1263, %v1351
        %v1353 = vsel %vm590, %v1267, %v1352
        %v1354 = vsel %vm592, %v1271, %v1353
        %v1355 = vsel %vm594, %v1275, %v1354
        %v1356 = vsel %vm584, %v1287, %v1283
        %v1357 = vsel %vm586, %v1291, %v1356
        %v1358 = vsel %vm588, %v1295, %v1357
        %v1359 = vsel %vm590, %v1299, %v1358
        %v1360 = vsel %vm592, %v1303, %v1359
        %v1361 = vsel %vm594, %v1307, %v1360
        %v1362 = vsel %vm584, %v1319, %v1315
        %v1363 = vsel %vm586, %v1323, %v1362
        %v1364 = vsel %vm588, %v1327, %v1363
        %v1365 = vsel %vm590, %v1331, %v1364
        %v1366 = vsel %vm592, %v1335, %v1365
        %v1367 = vsel %vm594, %v1339, %v1366
        %s1376 = scalar_lea.vmem %s161, 96
        %1377 = vst.msk [vmem:[%s1376 - $0x1] sm:$0xfe] %vm787, %v1349
        %1378 = vst.msk [vmem:[%s1376 + $0x7] sm:$0x1] %vm789, %v1247
        %1379 = vst.msk [vmem:[%s1376 + $0x7] sm:$0xfe] %vm787, %v1355
        %1380 = vst.msk [vmem:[%s1376 + $0xf] sm:$0x1] %vm789, %v1279
        %1381 = vst.msk [vmem:[%s1376 + $0xf] sm:$0xfe] %vm787, %v1361
        %1382 = vst.msk [vmem:[%s1376 + $0x17] sm:$0x1] %vm789, %v1311
        %1383 = vst.msk [vmem:[%s1376 + $0x17] sm:$0xfe] %vm787, %v1367
        %1384 = vst.msk [vmem:[%s1376 + $0x1f] sm:$0x1] %vm789, %v1343
        %p1385 = scmp.lt.s32.totalorder %s19, 1
        %s1386 = scalar_select %p1385, %s19, 1
        %p1387 = scmp.lt.s32.totalorder %s20, 0
        %s1388 = scalar_select %p1387, %s20, 0
        %s1389 = smul.addr %s1386, 16
        %s1390 = sadd.s32 %s1388, %s1389
        %s1391 = smul.addr %s1390, 8
        %s1392 = scalar_lea.vmem %s1, %s1391
        // Predicated region
        $region29: #{tpu_custom_call.1} parent=23 // pred_check
          %p1393 = pneg %p75
        $region30: #{tpu_custom_call.1} parent=23 // pred_check_branch
          %1395 = sbr.rel (%p1393) target = $region32
        $region31: #{tpu_custom_call.1} parent=23 // pred_region
          _
        $region32: #{tpu_custom_call.1} parent=23 // pred_fallthru
          _
      $region24: #{tpu_custom_call.1} parent=5 // pred_fallthru
        _
      %p1396 = scmp.le.s32.totalorder 2, %s10
      // Predicated region
      $region33: #{tpu_custom_call.1} parent=5 // pred_check
        %p1397 = pneg %p1396
      $region34: #{tpu_custom_call.1} parent=5 // pred_check_branch
        %1399 = sbr.rel (%p1397) target = $region36
      $region35: #{tpu_custom_call.1} parent=5 // pred_region
        %s1400 = ssub.s32 %s10, 2
        // Predicated region
        $region37: #{tpu_custom_call.1} parent=35 // pred_check
          %p1401 = pneg %p81
        $region38: #{tpu_custom_call.1} parent=35 // pred_check_branch
          %1403 = sbr.rel (%p1401) target = $region40
        $region39: #{tpu_custom_call.1} parent=35 // pred_region
          %p1404 = scmp.lt.s32.totalorder %s21, 1
          %s1405 = scalar_select %p1404, %s21, 1
          %p1406 = scmp.lt.s32.totalorder %s22, 0
          %s1407 = scalar_select %p1406, %s22, 0
          %s1408 = smul.addr %s1405, 16
          %s1409 = sadd.s32 %s1407, %s1408
          %s1410 = smul.addr %s1409, 8
          %s1411 = scalar_lea.vmem %s1, %s1410
        $region40: #{tpu_custom_call.1} parent=35 // pred_fallthru
          _
      $region36: #{tpu_custom_call.1} parent=5 // pred_fallthru
        _
    $region6: #{tpu_custom_call.1} parent=1 // loop_footer
      %s14 = sadd.s32 1, %s10
    $region7: #{tpu_custom_call.1} parent=1 // loop_footer_branch
      %9 = sbr.rel target = $region3
    $region8: #{tpu_custom_call.1} parent=1 // loop_exit
      _
    %1412 = vsyncpa [#allocation3], 1
    %s1413 = scalar_lea.sflag [#allocation3], 1
    %1414 = vsyncpa %s1413, 1

</llo_original>
